<compile_context>
chip_gen: v6e
topology: v6e:2x2x1
jax: 0.10.0
libtpu: 0.0.40
codegen_flags: <defaults>
</compile_context>

<pallas_src>
import functools

import jax
import jax.numpy as jnp
import numpy as np
from jax.experimental import pallas as pl
from jax.experimental.pallas import tpu as pltpu


_LANE = 512                      # lane-dense flatten width (multiple of 128)
_MAX_BLOCK_ROWS = 512            # rows per tile (multiple of 8)
_MAX_BLOCK_BYTES = 2 * 1024 * 1024  # per-buffer tile budget (v7x-safe)


def _round_up(n, m):
    return ((n + m - 1) // m) * m


# ----------------------------- elementwise kernels ---------------------------

def _identity_kernel(x_ref, o_ref):
    o_ref[...] = x_ref[...]


def _sigmoid_kernel(x_ref, o_ref):
    x = x_ref[...].astype(jnp.float32)
    o_ref[...] = pl.reciprocal(1.0 + jnp.exp(-x), approx=True).astype(o_ref.dtype)


def _tanh_kernel(x_ref, o_ref):
    o_ref[...] = jnp.tanh(x_ref[...].astype(jnp.float32)).astype(o_ref.dtype)


def _clamp_kernel(x_ref, o_ref, *, min_val, max_val):
    o_ref[...] = jnp.clip(x_ref[...], min_val, max_val).astype(o_ref.dtype)


# ------------------------- last-axis reduction kernels ------------------------

def _softmax_last_kernel(x_ref, o_ref):
    x = x_ref[...].astype(jnp.float32)
    m = jnp.max(x, axis=-1, keepdims=True)
    e = jnp.exp(x - m)
    s = jnp.sum(e, axis=-1, keepdims=True)
    o_ref[...] = (e * pl.reciprocal(s, approx=True)).astype(o_ref.dtype)


def _logsoftmax_last_kernel(x_ref, o_ref):
    x = x_ref[...].astype(jnp.float32)
    m = jnp.max(x, axis=-1, keepdims=True)
    shifted = x - m
    lse = jnp.log(jnp.sum(jnp.exp(shifted), axis=-1, keepdims=True))
    o_ref[...] = (shifted - lse).astype(o_ref.dtype)


def _argmax_last_kernel(x_ref, o_ref):
    x = x_ref[...].astype(jnp.float32)
    x = jnp.where(jnp.isnan(x), jnp.inf, x)      # NaN treated as maximal (torch)
    m = jnp.max(x, axis=-1, keepdims=True)
    idx = jax.lax.broadcasted_iota(jnp.int32, x.shape, x.ndim - 1)
    masked = jnp.where(x == m, idx, jnp.iinfo(jnp.int32).max)
    o_ref[...] = jnp.min(masked, axis=-1, keepdims=True)


# --------------------- channel (sublane-axis) reduction kernels ---------------
# Block shape (1, C, block_b): reduce over axis=1 (C on sublanes), keep the
# spatial product lane-dense.

def _softmax_chan_kernel(x_ref, o_ref):
    x = x_ref[...].astype(jnp.float32)
    m = jnp.max(x, axis=1, keepdims=True)
    e = jnp.exp(x - m)
    s = jnp.sum(e, axis=1, keepdims=True)
    o_ref[...] = (e * pl.reciprocal(s, approx=True)).astype(o_ref.dtype)


def _logsoftmax_chan_kernel(x_ref, o_ref):
    x = x_ref[...].astype(jnp.float32)
    m = jnp.max(x, axis=1, keepdims=True)
    shifted = x - m
    lse = jnp.log(jnp.sum(jnp.exp(shifted), axis=1, keepdims=True))
    o_ref[...] = (shifted - lse).astype(o_ref.dtype)


def _argmax_chan_kernel(x_ref, o_ref):
    x = x_ref[...].astype(jnp.float32)
    x = jnp.where(jnp.isnan(x), jnp.inf, x)
    m = jnp.max(x, axis=1, keepdims=True)
    idx = jax.lax.broadcasted_iota(jnp.int32, x.shape, 1)
    masked = jnp.where(x == m, idx, jnp.iinfo(jnp.int32).max)
    o_ref[...] = jnp.min(masked, axis=1, keepdims=True)


_LAST_KERNELS = {"softmax": _softmax_last_kernel,
                 "logsoftmax": _logsoftmax_last_kernel,
                 "argmax": _argmax_last_kernel}
_CHAN_KERNELS = {"softmax": _softmax_chan_kernel,
                 "logsoftmax": _logsoftmax_chan_kernel,
                 "argmax": _argmax_chan_kernel}


# -------------------------- flat (dim=None) argmax ----------------------------

def _argmax_flat_kernel(x_ref, o_ref, m_sc, i_sc):
    step = pl.program_id(0)
    bm, lane = x_ref.shape

    @pl.when(step == 0)
    def _():
        m_sc[...] = jnp.full_like(m_sc, -jnp.inf)
        i_sc[...] = jnp.zeros_like(i_sc)

    x = x_ref[...].astype(jnp.float32)
    x = jnp.where(jnp.isnan(x), jnp.inf, x)

    row_max = jnp.max(x, axis=1, keepdims=True)            # (bm, 1)
    blk_max = jnp.max(row_max, axis=0, keepdims=True)       # (1, 1)

    ridx = jax.lax.broadcasted_iota(jnp.int32, x.shape, 0)
    cidx = jax.lax.broadcasted_iota(jnp.int32, x.shape, 1)
    flat_idx = ridx * lane + cidx
    masked = jnp.where(x == blk_max, flat_idx, jnp.iinfo(jnp.int32).max)
    row_min = jnp.min(masked, axis=1, keepdims=True)
    blk_idx = jnp.min(row_min, axis=0, keepdims=True) + step * (bm * lane)

    better = blk_max > m_sc[...]
    m_sc[...] = jnp.where(better, blk_max, m_sc[...])
    i_sc[...] = jnp.where(better, blk_idx, i_sc[...])

    @pl.when(step == pl.num_programs(0) - 1)
    def _():
        o_ref[...] = i_sc[...]


# ------------------------------- pallas wrappers ------------------------------

def _elementwise(kernel, x):
    """Lane-dense tiled elementwise op: (rows, 512) blocks, parallel grid."""
    orig_shape, orig_dtype = x.shape, x.dtype
    n = x.size
    if n == 0:
        return x
    flat = x.reshape(-1)
    rows = pl.cdiv(n, _LANE)
    block_rows = min(_MAX_BLOCK_ROWS, _round_up(rows, 8))
    rows_p = _round_up(rows, block_rows)
    pad = rows_p * _LANE - n
    if pad:
        flat = jnp.pad(flat, (0, pad))
    x2 = flat.reshape(rows_p, _LANE)

    y2 = pl.pallas_call(
        kernel,
        out_shape=jax.ShapeDtypeStruct((rows_p, _LANE), orig_dtype),
        grid=(rows_p // block_rows,),
        in_specs=[pl.BlockSpec((block_rows, _LANE), lambda i: (i, 0))],
        out_specs=pl.BlockSpec((block_rows, _LANE), lambda i: (i, 0)),
        compiler_params=pltpu.CompilerParams(dimension_semantics=("parallel",)),
    )(x2)
    return y2.reshape(-1)[:n].reshape(orig_shape)


def _reduce_last_axis(kernel, x, out_dtype, keep_reduced):
    """Reduce over the (already-last) axis: 2D (M, K), K fully in-block."""
    *lead, k = x.shape
    m = int(np.prod(lead)) if lead else 1
    x2 = x.reshape(m, k)

    bytes_per_row = max(k, 1) * 4
    block_m = min(_MAX_BLOCK_ROWS,
                  max(8, (_MAX_BLOCK_BYTES // bytes_per_row) // 8 * 8))
    block_m = min(block_m, _round_up(m, 8))
    m_p = _round_up(m, block_m)
    if m_p != m:
        x2 = jnp.pad(x2, ((0, m_p - m), (0, 0)))

    out_k = k if keep_reduced else 1
    y2 = pl.pallas_call(
        kernel,
        out_shape=jax.ShapeDtypeStruct((m_p, out_k), out_dtype),
        grid=(m_p // block_m,),
        in_specs=[pl.BlockSpec((block_m, k), lambda i: (i, 0))],
        out_specs=pl.BlockSpec((block_m, out_k), lambda i: (i, 0)),
        compiler_params=pltpu.CompilerParams(dimension_semantics=("parallel",)),
    )(x2)
    y2 = y2[:m]
    if keep_reduced:
        return y2.reshape(x.shape)
    return y2.reshape(tuple(lead))


def _reduce_channel(kernel, x, d, out_dtype, keep_reduced):
    """Reduce over a non-last dim without transposes: (A, C, B), reduce C."""
    shape = x.shape
    A = int(np.prod(shape[:d])) if d else 1
    C = shape[d]
    B = int(np.prod(shape[d + 1:]))
    x3 = x.reshape(A, C, B)

    cands = [c for c in (2048, 1024, 512, 256, 128)
             if C * c * 4 <= _MAX_BLOCK_BYTES]
    block_b = next((c for c in cands if B % c == 0), None)
    if block_b is None:
        if C * B * 4 <= _MAX_BLOCK_BYTES or not cands:
            block_b, B_p = B, B
        else:
            block_b = cands[-1]
            B_p = _round_up(B, block_b)
    else:
        B_p = B
    if B_p != B:
        x3 = jnp.pad(x3, ((0, 0), (0, 0), (0, B_p - B)))

    out_C = C if keep_reduced else 1
    y3 = pl.pallas_call(
        kernel,
        out_shape=jax.ShapeDtypeStruct((A, out_C, B_p), out_dtype),
        grid=(A, B_p // block_b),
        in_specs=[pl.BlockSpec((1, C, block_b), lambda a, b: (a, 0, b))],
        out_specs=pl.BlockSpec((1, out_C, block_b), lambda a, b: (a, 0, b)),
        compiler_params=pltpu.CompilerParams(
            dimension_semantics=("parallel", "parallel")),
    )(x3)
    y3 = y3[:, :, :B]
    if keep_reduced:
        return y3.reshape(shape)
    return y3.reshape(shape[:d] + shape[d + 1:])


def _reduce(op, x, dim):
    d = dim % x.ndim
    keep = op != "argmax"
    out_dtype = jnp.int32 if op == "argmax" else x.dtype
    if d == x.ndim - 1:
        return _reduce_last_axis(_LAST_KERNELS[op], x, out_dtype, keep)
    return _reduce_channel(_CHAN_KERNELS[op], x, d, out_dtype, keep)


def _argmax_flat(x):
    """torch.argmax(x) — global argmax over the flattened tensor."""
    # TODO(synk): index emitted as int32 (torch returns int64); flattened
    # indices >= 2**31 would overflow.
    n = x.size
    flat = x.reshape(-1)
    rows = pl.cdiv(n, _LANE)
    block_m = min(_MAX_BLOCK_ROWS, _round_up(rows, 8))
    rows_p = _round_up(rows, block_m)
    pad = rows_p * _LANE - n
    if pad:
        if jnp.issubdtype(x.dtype, jnp.floating):
            pad_val = -jnp.inf
        else:
            pad_val = jnp.iinfo(x.dtype).min
        flat = jnp.pad(flat, (0, pad), constant_values=pad_val)
    x2 = flat.reshape(rows_p, _LANE)

    out = pl.pallas_call(
        _argmax_flat_kernel,
        out_shape=jax.ShapeDtypeStruct((1, 1), jnp.int32),
        grid=(rows_p // block_m,),
        in_specs=[pl.BlockSpec((block_m, _LANE), lambda i: (i, 0))],
        out_specs=pl.BlockSpec((1, 1), lambda i: (0, 0)),
        scratch_shapes=[pltpu.VMEM((1, 1), jnp.float32),
                        pltpu.VMEM((1, 1), jnp.int32)],
        compiler_params=pltpu.CompilerParams(dimension_semantics=("arbitrary",)),
    )(x2)
    return out.reshape(())


def _infer_softmax_dim(ndim):
    # matches torch.nn.functional._get_softmax_dim legacy behavior
    return 0 if ndim in (0, 1, 3) else 1


# ------------------------------ Activation module -----------------------------

class Activation:
    """JAX/Pallas port of smp_old.Activation."""

    def __init__(self, name, **params):
        if name is None or name == "identity":
            self._fn = lambda x: _elementwise(_identity_kernel, x)
        elif name == "sigmoid":
            self._fn = lambda x: _elementwise(_sigmoid_kernel, x)
        elif name == "softmax2d":
            self._fn = lambda x: _reduce("softmax", x, 1)
        elif name == "softmax":
            dim = params.get("dim", None)
            self._fn = lambda x: _reduce(
                "softmax", x,
                _infer_softmax_dim(x.ndim) if dim is None else dim)
        elif name == "logsoftmax":
            dim = params.get("dim", None)
            self._fn = lambda x: _reduce(
                "logsoftmax", x,
                _infer_softmax_dim(x.ndim) if dim is None else dim)
        elif name == "tanh":
            self._fn = lambda x: _elementwise(_tanh_kernel, x)
        elif name == "argmax":
            dim = params.get("dim", None)
            if dim is None:
                self._fn = _argmax_flat
            else:
                self._fn = lambda x: _reduce("argmax", x, dim)
        elif name == "argmax2d":
            self._fn = lambda x: _reduce("argmax", x, 1)
        elif name == "clamp":
            mn = float(params.get("min", 0))
            mx = float(params.get("max", 1))
            kern = functools.partial(_clamp_kernel, min_val=mn, max_val=mx)
            self._fn = lambda x: _elementwise(kern, x)
        elif callable(name):
            self._fn = name(**params)
        else:
            raise ValueError(
                "Activation should be callable/sigmoid/softmax/logsoftmax/"
                f"tanh/argmax/argmax2d/clamp/None; got {name}")

    def __call__(self, x):
        return self._fn(x)


# ----------------------------------- main -------------------------------------

if __name__ == "__main__":
    key = jax.random.PRNGKey(0)
    x = jax.random.normal(key, (2, 4, 16, 16), dtype=jnp.float32)  # NCHW

    # identity
    y = jax.block_until_ready(Activation("identity")(x))
    assert y.shape == x.shape and np.allclose(np.asarray(y), np.asarray(x))

    # sigmoid (approx reciprocal on EUP -> slightly looser tolerance)
    y = jax.block_until_ready(Activation("sigmoid")(x))
    assert np.allclose(np.asarray(y), np.asarray(jax.nn.sigmoid(x)),
                       atol=2e-3, rtol=2e-3)

    # tanh (f32 compute)
    y = jax.block_until_ready(Activation("tanh")(x))
    assert np.allclose(np.asarray(y), np.asarray(jnp.tanh(x)), atol=1e-6)

    # clamp(0, 1)
    y = jax.block_until_ready(Activation("clamp", min=0, max=1)(x))
    assert np.allclose(np.asarray(y), np.asarray(jnp.clip(x, 0.0, 1.0)), atol=1e-6)

    # softmax2d (channel dim = 1, sublane reduction, no transposes)
    y = jax.block_until_ready(Activation("softmax2d")(x))
    assert y.shape == x.shape
    assert np.allclose(np.asarray(y), np.asarray(jax.nn.softmax(x, axis=1)),
                       atol=2e-3, rtol=2e-3)

    # softmax with explicit last dim
    y = jax.block_until_ready(Activation("softmax", dim=-1)(x))
    assert np.allclose(np.asarray(y), np.asarray(jax.nn.softmax(x, axis=-1)),
                       atol=2e-3, rtol=2e-3)

    # logsoftmax over channels
    y = jax.block_until_ready(Activation("logsoftmax", dim=1)(x))
    assert np.allclose(np.asarray(y), np.asarray(jax.nn.log_softmax(x, axis=1)),
                       atol=1e-5)

    # argmax2d -> (N, H, W) int32 indices
    y = jax.block_until_ready(Activation("argmax2d")(x))
    assert y.shape == (2, 16, 16)
    assert np.array_equal(np.asarray(y),
                          np.asarray(jnp.argmax(x, axis=1)).astype(np.int32))

    # argmax with dim=None -> scalar index into flattened tensor
    y = jax.block_until_ready(Activation("argmax")(x))
    assert y.shape == ()
    assert int(y) == int(jnp.argmax(x))

    print("KERNEL_OK")
</pallas_src>

<mosaic_0001>
module attributes {stable_mosaic.version = 11 : i64} {
  func.func @_identity_kernel(%arg0: i32, %arg1: memref<8x512xf32, #tpu.memory_space<vmem>>, %arg2: memref<8x512xf32, #tpu.memory_space<vmem>>) attributes {dimension_semantics = [#tpu.dimension_semantics<parallel>], iteration_bounds = array<i64: 1>, scalar_prefetch = 0 : i64, scratch_operands = 0 : i64, tpu.core_type = #tpu.core_type<tc>, window_params = [{transform_indices = @transform_0, window_bounds = array<i64: 8, 512>}, {transform_indices = @transform_1, window_bounds = array<i64: 8, 512>}]} {
    %c0 = arith.constant 0 : index
    %c0_0 = arith.constant 0 : index
    %0 = vector.load %arg1[%c0, %c0_0] : memref<8x512xf32, #tpu.memory_space<vmem>>, vector<8x512xf32>
    %c0_1 = arith.constant 0 : index
    %c0_2 = arith.constant 0 : index
    %1 = vector.load %arg2[%c0_1, %c0_2] : memref<8x512xf32, #tpu.memory_space<vmem>>, vector<8x512xf32>
    tpu.vector_store %arg2[%c0_1, %c0_2], %0 {strides = array<i32>} : memref<8x512xf32, #tpu.memory_space<vmem>>, vector<8x512xf32>,
    return
  }
  func.func @transform_0(%arg0: i32) -> (i32, i32) {
    %c0_i32 = arith.constant 0 : i32
    %c0_i32_0 = arith.constant 0 : i32
    return %arg0, %c0_i32 : i32, i32
  }
  func.func @transform_1(%arg0: i32) -> (i32, i32) {
    %c0_i32 = arith.constant 0 : i32
    %c0_i32_0 = arith.constant 0 : i32
    return %arg0, %c0_i32 : i32, i32
  }
}

</mosaic_0001>

<llo_original>
// kernel: tpu_custom_call.1
$region0: #{tpu_custom_call.1}
  #allocation0 [shape = 'u32[]', space=smem, size = 0x4, offset = 0x4, fixed_abs, tag = 'smem constant byte address 0x4 - core index']
  #allocation1 [shape = 'u32[144,128]{1,0:T(1,128)}', space=vmem, size = 0x12000, scoped, tag = 'internal scratch']
  %s0 = inlined_call_operand.hbm [shape: f32[8,512], index: 0, kind: input, shape index: {}]
  %s1 = inlined_call_operand.hbm [shape: f32[8,512], index: 1, kind: output, shape index: {}]
  %s2 = sld [smem:[#allocation0]]
  $region18: #{tpu_custom_call.1} parent=0
    _
  %s4 = ssub.s32 1, %s2
  %s5 = scalar_select 0, %s4, %s2
  $region1: #{tpu_custom_call.1} parent=0
    #allocation2 [shape = 'u8[16384]{0}', space=vmem, size = 0x4000, scoped, tag = 'input window, operand 0, single buffered']
    #allocation3 [shape = 's32[1]{0}', space=sflag, size = 0x4, scoped, tag = 'scoped memory for tpu_custom_call.1']
    #allocation4 [shape = 's32[1]{0}', space=sflag, size = 0x4, scoped, tag = 'scoped memory for tpu_custom_call.1']
    #allocation5 [shape = 'u8[16384]{0}', space=vmem, size = 0x4000, scoped, tag = 'output window, operand 0, single buffered']
    %6 = vsyncpa [#allocation3], 0
    %7 = vsyncpa [#allocation4], 0
    // Predicated region
    $region2: #{tpu_custom_call.1} parent=1 // pred_check
      _
    $region3: #{tpu_custom_call.1} parent=1 // pred_check_branch
      %9 = sbr.rel (0) target = $region5
    $region4: #{tpu_custom_call.1} parent=1 // pred_region
      %s11 = ssub.s32 512, 512
      %12 = vsyncadd [#allocation3], %s11
      %s14 = sshll.u32 [#allocation2], 4
      %s15 = int_to_ptr.vmem [resolvable:$true] %s14
      %17 = dma.hbm_to_vmem [thread:$0]  %s0, 512, %s15, [#allocation3]
    $region5: #{tpu_custom_call.1} parent=1 // pred_fallthru
      _
    // Predicated region
    $region6: #{tpu_custom_call.1} parent=1 // pred_check
      _
    $region7: #{tpu_custom_call.1} parent=1 // pred_check_branch
      %19 = sbr.rel (0) target = $region9
    $region8: #{tpu_custom_call.1} parent=1 // pred_region
      %20 = dma.done [#allocation3], 512
    $region9: #{tpu_custom_call.1} parent=1 // pred_fallthru
      _
    %v21 = vld [vmem:[#allocation2] sm:$0xff]
    %v22 = vld [vmem:[#allocation2 + $0x8] sm:$0xff]
    %v23 = vld [vmem:[#allocation2 + $0x10] sm:$0xff]
    %v24 = vld [vmem:[#allocation2 + $0x18] sm:$0xff]
    %25 = vst [vmem:[#allocation5] sm:$0xff] %v21
    %26 = vst [vmem:[#allocation5 + $0x8] sm:$0xff] %v22
    %27 = vst [vmem:[#allocation5 + $0x10] sm:$0xff] %v23
    %28 = vst [vmem:[#allocation5 + $0x18] sm:$0xff] %v24
    // Predicated region
    $region10: #{tpu_custom_call.1} parent=1 // pred_check
      _
    $region11: #{tpu_custom_call.1} parent=1 // pred_check_branch
      %30 = sbr.rel (0) target = $region13
    $region12: #{tpu_custom_call.1} parent=1 // pred_region
      %s32 = ssub.s32 512, 512
      %33 = vsyncadd [#allocation4], %s32
      %s35 = sshll.u32 [#allocation5], 4
      %s36 = int_to_ptr.vmem [resolvable:$true] %s35
      %38 = dma.vmem_to_hbm [thread:$0]  %s36, 512, %s1, [#allocation4]
    $region13: #{tpu_custom_call.1} parent=1 // pred_fallthru
      _
    // Predicated region
    $region14: #{tpu_custom_call.1} parent=1 // pred_check
      _
    $region15: #{tpu_custom_call.1} parent=1 // pred_check_branch
      %40 = sbr.rel (0) target = $region17
    $region16: #{tpu_custom_call.1} parent=1 // pred_region
      %41 = dma.done [#allocation4], 512
    $region17: #{tpu_custom_call.1} parent=1 // pred_fallthru
      _
    %42 = vsyncpa [#allocation3], 1
    %43 = vsyncpa [#allocation4], 1

</llo_original>
